<compile_context>
chip_gen: v7x
topology: tpu7x:2x2x1
jax: 0.10.0
libtpu: 0.0.40
codegen_flags: <defaults>
</compile_context>

<pallas_src>
import functools

import jax
import jax.numpy as jnp
from jax import lax
from jax.experimental import pallas as pl
from jax.experimental.pallas import tpu as pltpu

INPUT_SIZE = 10
HIDDEN_SIZE = 20
OUTPUT_SIZE = 3

TB_MAX = 8192   # max rows DMA'd per grid step
SUB = 256       # rows computed per inner sub-chunk (bounds vreg pressure)


def _round_up(n, m):
    return ((n + m - 1) // m) * m


def _choose_tile(batch):
    """Pick (tile, sub): tile = rows per grid step, sub = inner chunk rows."""
    # Target >= ~4 grid steps (megacore sharding on v7x), cap the per-step
    # tile so pipelined VMEM stays well under every generation's budget.
    tile = _round_up(max(1, pl.cdiv(batch, 4)), 8)
    tile = max(8, min(tile, TB_MAX))
    sub = min(SUB, tile)
    tile = min(_round_up(tile, sub), TB_MAX)   # tile is a multiple of sub
    return tile, sub


def _mlp_kernel(x_ref, w1_ref, b1_ref, w2_ref, b2_ref, o_ref, *, sub, n_sub):
    # Weights / biases are tiny and VMEM-resident (constant block index).
    w1 = w1_ref[...]
    b1 = b1_ref[...]
    w2 = w2_ref[...]
    b2 = b2_ref[...]

    def compute(s):
        r = pl.multiple_of(s * sub, sub)
        x = x_ref[pl.ds(r, sub), :]                                   # (sub, 10)
        h = jnp.dot(x, w1, preferred_element_type=jnp.float32) + b1
        h = jnp.maximum(h, 0.0)                                       # (sub, 20)
        z = jnp.dot(h, w2, preferred_element_type=jnp.float32) + b2   # (sub, 3)
        # Row-wise max-stabilized softmax over the class dim.
        z_max = jnp.max(z, axis=-1, keepdims=True)
        e = jnp.exp(z - z_max)
        probs = e / jnp.sum(e, axis=-1, keepdims=True)
        o_ref[pl.ds(r, sub), :] = probs.astype(o_ref.dtype)

    if n_sub == 1:
        compute(0)
    else:
        def body(s, carry):
            compute(s)
            return carry
        lax.fori_loop(0, n_sub, body, 0, unroll=2)


def simple_neural_net(x, w1, b1, w2, b2):
    """x: (B, INPUT_SIZE) -> (B, OUTPUT_SIZE) float32 probabilities."""
    batch = x.shape[0]
    tile, sub = _choose_tile(batch)
    grid = (pl.cdiv(batch, tile),)

    kernel = functools.partial(_mlp_kernel, sub=sub, n_sub=tile // sub)

    return pl.pallas_call(
        kernel,
        out_shape=jax.ShapeDtypeStruct((batch, OUTPUT_SIZE), jnp.float32),
        grid_spec=pl.GridSpec(
            grid=grid,
            in_specs=[
                # x streams one batch tile per grid step (double-buffered DMA).
                pl.BlockSpec((tile, INPUT_SIZE), lambda i: (i, 0)),
                # Weights / biases: constant block index -> stay VMEM-resident.
                pl.BlockSpec((INPUT_SIZE, HIDDEN_SIZE), lambda i: (0, 0)),
                pl.BlockSpec((1, HIDDEN_SIZE), lambda i: (0, 0)),
                pl.BlockSpec((HIDDEN_SIZE, OUTPUT_SIZE), lambda i: (0, 0)),
                pl.BlockSpec((1, OUTPUT_SIZE), lambda i: (0, 0)),
            ],
            out_specs=pl.BlockSpec((tile, OUTPUT_SIZE), lambda i: (i, 0)),
        ),
        compiler_params=pltpu.CompilerParams(
            # Independent batch tiles -> megacore sharding on v7x.
            dimension_semantics=("parallel",),
            # ~2 KiB/row of pipelined VMEM at the max tile (~16-20 MiB total);
            # 48 MiB budget is safe on v5e/v6e (128 MiB) and v7x (64 MiB).
            vmem_limit_bytes=48 * 1024 * 1024,
        ),
    )(x.astype(jnp.float32),
      w1.astype(jnp.float32),
      b1.reshape(1, HIDDEN_SIZE).astype(jnp.float32),
      w2.astype(jnp.float32),
      b2.reshape(1, OUTPUT_SIZE).astype(jnp.float32))


def init_params(key):
    """Deterministic PyTorch-style init: U(-1/sqrt(fan_in), 1/sqrt(fan_in))."""
    k1, k2, k3, k4 = jax.random.split(key, 4)
    bound1 = 1.0 / jnp.sqrt(float(INPUT_SIZE))
    bound2 = 1.0 / jnp.sqrt(float(HIDDEN_SIZE))
    # Stored as (in, out) so the kernel computes x @ W (torch stores (out, in)).
    w1 = jax.random.uniform(k1, (INPUT_SIZE, HIDDEN_SIZE), jnp.float32,
                            -bound1, bound1)
    b1 = jax.random.uniform(k2, (HIDDEN_SIZE,), jnp.float32, -bound1, bound1)
    w2 = jax.random.uniform(k3, (HIDDEN_SIZE, OUTPUT_SIZE), jnp.float32,
                            -bound2, bound2)
    b2 = jax.random.uniform(k4, (OUTPUT_SIZE,), jnp.float32, -bound2, bound2)
    return w1, b1, w2, b2


def _reference(x, w1, b1, w2, b2):
    hp = jax.lax.Precision.HIGHEST
    h = jnp.maximum(jnp.dot(x, w1, precision=hp) + b1, 0.0)
    z = jnp.dot(h, w2, precision=hp) + b2
    return jax.nn.softmax(z, axis=1)


if __name__ == "__main__":
    key = jax.random.PRNGKey(0)
    pkey, xkey = jax.random.split(key)
    w1, b1, w2, b2 = init_params(pkey)

    # batch=8: exact grid; batch=53: exercises the clipped partial final block.
    for batch in (8, 53):
        x = jax.random.normal(jax.random.fold_in(xkey, batch),
                              (batch, INPUT_SIZE), jnp.float32)
        out = jax.block_until_ready(simple_neural_net(x, w1, b1, w2, b2))
        ref = _reference(x, w1, b1, w2, b2)

        assert out.shape == (batch, OUTPUT_SIZE)
        assert bool(jnp.all(jnp.isfinite(out)))
        assert jnp.allclose(jnp.sum(out, axis=1), 1.0, atol=1e-5)
        assert jnp.allclose(out, ref, atol=5e-3, rtol=1e-3), (
            float(jnp.max(jnp.abs(out - ref))))

    print("KERNEL_OK")
</pallas_src>

<mosaic_0001>
module attributes {stable_mosaic.version = 11 : i64} {
  func.func @_mlp_kernel(%arg0: i32, %arg1: memref<8x10xf32, #tpu.memory_space<vmem>>, %arg2: memref<10x20xf32, #tpu.memory_space<vmem>>, %arg3: memref<1x20xf32, #tpu.memory_space<vmem>>, %arg4: memref<20x3xf32, #tpu.memory_space<vmem>>, %arg5: memref<1x3xf32, #tpu.memory_space<vmem>>, %arg6: memref<8x3xf32, #tpu.memory_space<vmem>>) attributes {dimension_semantics = [#tpu.dimension_semantics<parallel>], iteration_bounds = array<i64: 1>, scalar_prefetch = 0 : i64, scratch_operands = 0 : i64, tpu.core_type = #tpu.core_type<tc>, window_params = [{transform_indices = @transform_0, window_bounds = array<i64: 8, 10>}, {pipeline_mode = #tpu.pipeline_mode<synchronous>, transform_indices = @transform_1, window_bounds = array<i64: 10, 20>}, {pipeline_mode = #tpu.pipeline_mode<synchronous>, transform_indices = @transform_2, window_bounds = array<i64: 1, 20>}, {pipeline_mode = #tpu.pipeline_mode<synchronous>, transform_indices = @transform_3, window_bounds = array<i64: 20, 3>}, {pipeline_mode = #tpu.pipeline_mode<synchronous>, transform_indices = @transform_4, window_bounds = array<i64: 1, 3>}, {transform_indices = @transform_5, window_bounds = array<i64: 8, 3>}]} {
    %c0 = arith.constant 0 : index
    %c0_0 = arith.constant 0 : index
    %0 = vector.load %arg2[%c0, %c0_0] : memref<10x20xf32, #tpu.memory_space<vmem>>, vector<10x20xf32>
    %c0_1 = arith.constant 0 : index
    %c0_2 = arith.constant 0 : index
    %1 = vector.load %arg3[%c0_1, %c0_2] : memref<1x20xf32, #tpu.memory_space<vmem>>, vector<1x20xf32>
    %c0_3 = arith.constant 0 : index
    %c0_4 = arith.constant 0 : index
    %2 = vector.load %arg4[%c0_3, %c0_4] : memref<20x3xf32, #tpu.memory_space<vmem>>, vector<20x3xf32>
    %c0_5 = arith.constant 0 : index
    %c0_6 = arith.constant 0 : index
    %3 = vector.load %arg5[%c0_5, %c0_6] : memref<1x3xf32, #tpu.memory_space<vmem>>, vector<1x3xf32>
    %c0_i32 = arith.constant 0 : i32
    %4 = tpu.assume_multiple %c0_i32, 8 : i32
    %5 = arith.index_cast %4 : i32 to index
    %c0_7 = arith.constant 0 : index
    %6 = vector.load %arg1[%5, %c0_7] : memref<8x10xf32, #tpu.memory_space<vmem>>, vector<8x10xf32>
    %cst = arith.constant dense<0.000000e+00> : vector<8x20xf32>
    %7 = tpu.matmul %6, %0, %cst {dimension_numbers = #tpu.dot_dimension_numbers<[1], [0], [0], [1], [0, 0, 1, 1], [], []>} : vector<8x10xf32>, vector<10x20xf32>, vector<8x20xf32> -> vector<8x20xf32>
    %8 = vector.broadcast %1 : vector<1x20xf32> to vector<8x20xf32>
    %9 = arith.addf %7, %8 : vector<8x20xf32>
    %cst_8 = arith.constant 0.000000e+00 : f32
    %10 = vector.broadcast %cst_8 : f32 to vector<8x20xf32>
    %11 = arith.maximumf %9, %10 : vector<8x20xf32>
    %cst_9 = arith.constant dense<0.000000e+00> : vector<8x3xf32>
    %12 = tpu.matmul %11, %2, %cst_9 {dimension_numbers = #tpu.dot_dimension_numbers<[1], [0], [0], [1], [0, 0, 1, 1], [], []>} : vector<8x20xf32>, vector<20x3xf32>, vector<8x3xf32> -> vector<8x3xf32>
    %13 = vector.broadcast %3 : vector<1x3xf32> to vector<8x3xf32>
    %14 = arith.addf %12, %13 : vector<8x3xf32>
    %cst_10 = arith.constant dense<0xFF800000> : vector<8xf32>
    %15 = vector.multi_reduction <maximumf>, %14, %cst_10 [1] : vector<8x3xf32> to vector<8xf32>
    %16 = vector.shape_cast %15 : vector<8xf32> to vector<8x1xf32>
    %17 = vector.broadcast %16 : vector<8x1xf32> to vector<8x3xf32>
    %18 = arith.subf %14, %17 : vector<8x3xf32>
    %19 = math.exp %18 : vector<8x3xf32>
    %cst_11 = arith.constant dense<0.000000e+00> : vector<8xf32>
    %20 = vector.multi_reduction <add>, %19, %cst_11 [1] : vector<8x3xf32> to vector<8xf32>
    %21 = vector.shape_cast %20 : vector<8xf32> to vector<8x1xf32>
    %22 = vector.broadcast %21 : vector<8x1xf32> to vector<8x3xf32>
    %23 = arith.divf %19, %22 : vector<8x3xf32>
    %24 = arith.index_cast %4 : i32 to index
    %c0_12 = arith.constant 0 : index
    %25 = vector.load %arg6[%24, %c0_12] : memref<8x3xf32, #tpu.memory_space<vmem>>, vector<8x3xf32>
    tpu.vector_store %arg6[%24, %c0_12], %23 {strides = array<i32>} : memref<8x3xf32, #tpu.memory_space<vmem>>, vector<8x3xf32>,
    return
  }
  func.func @transform_0(%arg0: i32) -> (i32, i32) {
    %c0_i32 = arith.constant 0 : i32
    %c0_i32_0 = arith.constant 0 : i32
    return %arg0, %c0_i32 : i32, i32
  }
  func.func @transform_1(%arg0: i32) -> (i32, i32) {
    %c0_i32 = arith.constant 0 : i32
    %c0_i32_0 = arith.constant 0 : i32
    %c0_i32_1 = arith.constant 0 : i32
    return %c0_i32, %c0_i32_0 : i32, i32
  }
  func.func @transform_2(%arg0: i32) -> (i32, i32) {
    %c0_i32 = arith.constant 0 : i32
    %c0_i32_0 = arith.constant 0 : i32
    %c0_i32_1 = arith.constant 0 : i32
    return %c0_i32, %c0_i32_0 : i32, i32
  }
  func.func @transform_3(%arg0: i32) -> (i32, i32) {
    %c0_i32 = arith.constant 0 : i32
    %c0_i32_0 = arith.constant 0 : i32
    %c0_i32_1 = arith.constant 0 : i32
    return %c0_i32, %c0_i32_0 : i32, i32
  }
  func.func @transform_4(%arg0: i32) -> (i32, i32) {
    %c0_i32 = arith.constant 0 : i32
    %c0_i32_0 = arith.constant 0 : i32
    %c0_i32_1 = arith.constant 0 : i32
    return %c0_i32, %c0_i32_0 : i32, i32
  }
  func.func @transform_5(%arg0: i32) -> (i32, i32) {
    %c0_i32 = arith.constant 0 : i32
    %c0_i32_0 = arith.constant 0 : i32
    return %arg0, %c0_i32 : i32, i32
  }
}

</mosaic_0001>

<llo_original>
// kernel: tpu_custom_call.1
$region0: #{tpu_custom_call.1}
  #allocation0 [shape = 'u32[]', space=smem, size = 0x4, offset = 0x4, fixed_abs, tag = 'smem constant byte address 0x4 - core index']
  #allocation1 [shape = 'u32[144,128]{1,0:T(1,128)}', space=vmem, size = 0x12000, scoped, tag = 'internal scratch']
  %s0 = inlined_call_operand.vmem [shape: f32[8,10], index: 0, kind: input, shape index: {}]
  %s1 = inlined_call_operand.vmem [shape: f32[10,20], index: 1, kind: input, shape index: {}]
  %s2 = inlined_call_operand.vmem [shape: f32[1,20], index: 2, kind: input, shape index: {}]
  %s3 = inlined_call_operand.vmem [shape: f32[20,3], index: 3, kind: input, shape index: {}]
  %s4 = inlined_call_operand.vmem [shape: f32[1,3], index: 4, kind: input, shape index: {}]
  %s5 = inlined_call_operand.vmem [shape: f32[8,3], index: 5, kind: output, shape index: {}]
  %s6 = sld [smem:[#allocation0]]
  $region30: #{tpu_custom_call.1} parent=0
    _
  %s8 = ssub.s32 1, %s6
  %s9 = scalar_select 0, %s8, %s6
  // Predicated region
  $region2: #{tpu_custom_call.1} parent=0 // pred_check
    _
  $region3: #{tpu_custom_call.1} parent=0 // pred_check_branch
    %11 = sbr.rel (0) target = $region5
  $region4: #{tpu_custom_call.1} parent=0 // pred_region
    _
  $region5: #{tpu_custom_call.1} parent=0 // pred_fallthru
    _
  // Predicated region
  $region6: #{tpu_custom_call.1} parent=0 // pred_check
    _
  $region7: #{tpu_custom_call.1} parent=0 // pred_check_branch
    %13 = sbr.rel (0) target = $region9
  $region8: #{tpu_custom_call.1} parent=0 // pred_region
    _
  $region9: #{tpu_custom_call.1} parent=0 // pred_fallthru
    _
  // Predicated region
  $region10: #{tpu_custom_call.1} parent=0 // pred_check
    _
  $region11: #{tpu_custom_call.1} parent=0 // pred_check_branch
    %15 = sbr.rel (0) target = $region13
  $region12: #{tpu_custom_call.1} parent=0 // pred_region
    _
  $region13: #{tpu_custom_call.1} parent=0 // pred_fallthru
    _
  // Predicated region
  $region14: #{tpu_custom_call.1} parent=0 // pred_check
    _
  $region15: #{tpu_custom_call.1} parent=0 // pred_check_branch
    %17 = sbr.rel (0) target = $region17
  $region16: #{tpu_custom_call.1} parent=0 // pred_region
    _
  $region17: #{tpu_custom_call.1} parent=0 // pred_fallthru
    _
  // Predicated region
  $region18: #{tpu_custom_call.1} parent=0 // pred_check
    _
  $region19: #{tpu_custom_call.1} parent=0 // pred_check_branch
    %19 = sbr.rel (0) target = $region21
  $region20: #{tpu_custom_call.1} parent=0 // pred_region
    _
  $region21: #{tpu_custom_call.1} parent=0 // pred_fallthru
    _
  %v20 = vld [vmem:[%s1] sm:$0xff]
  %v21 = vld [vmem:[%s1 + $0x8] sm:$0x3]
  %v22 = vld [vmem:[%s2] sm:$0x1]
  %v23 = vld [vmem:[%s3] sm:$0xff]
  %v24 = vld [vmem:[%s3 + $0x8] sm:$0xff]
  %v25 = vld [vmem:[%s3 + $0x10] sm:$0xf]
  %v26 = vld [vmem:[%s4] sm:$0x1]
  %v27 = vld [vmem:[%s0] sm:$0xff]
  %v29 = vlaneseq
  %v30 = vshrl.u32 %v29, 7
  %v31 = vsub.s32 0, %v30
  %v32 = vrot.slane %v22, %v31
  %vm34 = vcmask 80896
  %v36 = vsel %vm34, %v27, 0
  %vm38 = vcmask 1041408
  %v40 = vsel %vm38, %v21, 0
  %42 = vmatprep.subr.mxu0 0.0
  %43 = vmatpush1.msra.mxu0 %v20
  %44 = vmatprep.subr.mxu0 0.0
  %45 = vmatpush1.msra.mxu0 %v40
  %46 = vmatprep.subr.mxu0 0.0
  %47 = vmatpush1.msra.mxu0 0.0
  %48 = vmatprep.subr.mxu0 0.0
  %49 = vmatpush1.msra.mxu0 0.0
  %50 = vmatprep.subr.mxu0 0.0
  %51 = vmatpush1.msra.mxu0 0.0
  %52 = vmatprep.subr.mxu0 0.0
  %53 = vmatpush1.msra.mxu0 0.0
  %54 = vmatprep.subr.mxu0 0.0
  %55 = vmatpush1.msra.mxu0 0.0
  %56 = vmatprep.subr.mxu0 0.0
  %57 = vmatpush1.msra.mxu0 0.0
  %58 = vmatprep.subr.mxu0 0.0
  %59 = vmatpush1.msra.mxu0 0.0
  %60 = vmatprep.subr.mxu0 0.0
  %61 = vmatpush1.msra.mxu0 0.0
  %62 = vmatprep.subr.mxu0 0.0
  %63 = vmatpush1.msra.mxu0 0.0
  %64 = vmatprep.subr.mxu0 0.0
  %65 = vmatpush1.msra.mxu0 0.0
  %66 = vmatprep.subr.mxu0 0.0
  %67 = vmatpush1.msra.mxu0 0.0
  %68 = vmatprep.subr.mxu0 0.0
  %69 = vmatpush1.msra.mxu0 0.0
  %70 = vmatprep.subr.mxu0 0.0
  %71 = vmatpush1.msra.mxu0 0.0
  %72 = vmatprep.subr.mxu0 0.0
  %73 = vmatpush1.msra.mxu0 0.0
  %74 = vmatprep.subr.mxu0 0.0
  %75 = vmatpush1.msra.mxu0 0.0
  %76 = vmatprep.subr.mxu0 0.0
  %77 = vmatpush1.msra.mxu0 0.0
  %78 = vmatprep.subr.mxu0 0.0
  %79 = vmatpush1.msra.mxu0 0.0
  %80 = vmatprep.subr.mxu0 0.0
  %81 = vmatpush1.msra.mxu0 0.0
  %82 = vmatprep.subr.mxu0 0.0
  %83 = vmatpush1.msra.mxu0 0.0
  %84 = vmatprep.subr.mxu0 0.0
  %85 = vmatpush1.msra.mxu0 0.0
  %86 = vmatprep.subr.mxu0 0.0
  %87 = vmatpush1.msra.mxu0 0.0
  %88 = vmatprep.subr.mxu0 0.0
  %89 = vmatpush1.msra.mxu0 0.0
  %90 = vmatprep.subr.mxu0 0.0
  %91 = vmatpush1.msra.mxu0 0.0
  %92 = vmatprep.subr.mxu0 0.0
  %93 = vmatpush1.msra.mxu0 0.0
  %94 = vmatprep.subr.mxu0 0.0
  %95 = vmatpush1.msra.mxu0 0.0
  %96 = vmatprep.subr.mxu0 0.0
  %97 = vmatpush1.msra.mxu0 0.0
  %98 = vmatprep.subr.mxu0 0.0
  %99 = vmatpush1.msra.mxu0 0.0
  %100 = vmatprep.subr.mxu0 0.0
  %101 = vmatpush1.msra.mxu0 0.0
  %102 = vmatprep.subr.mxu0 0.0
  %103 = vmatpush1.msra.mxu0 0.0
  %104 = vmatprep.subr.mxu0 0.0
  %105 = vmatpush1.msra.mxu0 0.0
  %106 = vmatprep.mubr.f32.mxu0 0.0
  %107 = vmatmul.mubr.f32.gmra.mrb[0].mxu0 %v36
  %v108 = vpop.f32.mrb[0].mxu0
  %v109 = vadd.f32 %v32, %v108
  %v110 = vpop.f32.mrb[0].mxu0
  %111 = vdwg.mxu0
  %v112 = vmax.f32 %v109, 0.0
  %v114 = vlaneseq
  %v115 = vshrl.u32 %v114, 7
  %v116 = vsub.s32 0, %v115
  %v117 = vrot.slane %v26, %v116
  %vm119 = vcmask 162816
  %v121 = vsel %vm119, %v112, 0
  %vm123 = vcmask 1043456
  %v125 = vsel %vm123, %v25, 0
  %127 = vmatprep.subr.mxu0 0.0
  %128 = vmatpush1.msra.mxu0 %v23
  %129 = vmatprep.subr.mxu0 0.0
  %130 = vmatpush1.msra.mxu0 %v24
  %131 = vmatprep.subr.mxu0 0.0
  %132 = vmatpush1.msra.mxu0 %v125
  %133 = vmatprep.subr.mxu0 0.0
  %134 = vmatpush1.msra.mxu0 0.0
  %135 = vmatprep.subr.mxu0 0.0
  %136 = vmatpush1.msra.mxu0 0.0
  %137 = vmatprep.subr.mxu0 0.0
  %138 = vmatpush1.msra.mxu0 0.0
  %139 = vmatprep.subr.mxu0 0.0
  %140 = vmatpush1.msra.mxu0 0.0
  %141 = vmatprep.subr.mxu0 0.0
  %142 = vmatpush1.msra.mxu0 0.0
  %143 = vmatprep.subr.mxu0 0.0
  %144 = vmatpush1.msra.mxu0 0.0
  %145 = vmatprep.subr.mxu0 0.0
  %146 = vmatpush1.msra.mxu0 0.0
  %147 = vmatprep.subr.mxu0 0.0
  %148 = vmatpush1.msra.mxu0 0.0
  %149 = vmatprep.subr.mxu0 0.0
  %150 = vmatpush1.msra.mxu0 0.0
  %151 = vmatprep.subr.mxu0 0.0
  %152 = vmatpush1.msra.mxu0 0.0
  %153 = vmatprep.subr.mxu0 0.0
  %154 = vmatpush1.msra.mxu0 0.0
  %155 = vmatprep.subr.mxu0 0.0
  %156 = vmatpush1.msra.mxu0 0.0
  %157 = vmatprep.subr.mxu0 0.0
  %158 = vmatpush1.msra.mxu0 0.0
  %159 = vmatprep.subr.mxu0 0.0
  %160 = vmatpush1.msra.mxu0 0.0
  %161 = vmatprep.subr.mxu0 0.0
  %162 = vmatpush1.msra.mxu0 0.0
  %163 = vmatprep.subr.mxu0 0.0
  %164 = vmatpush1.msra.mxu0 0.0
  %165 = vmatprep.subr.mxu0 0.0
  %166 = vmatpush1.msra.mxu0 0.0
  %167 = vmatprep.subr.mxu0 0.0
  %168 = vmatpush1.msra.mxu0 0.0
  %169 = vmatprep.subr.mxu0 0.0
  %170 = vmatpush1.msra.mxu0 0.0
  %171 = vmatprep.subr.mxu0 0.0
  %172 = vmatpush1.msra.mxu0 0.0
  %173 = vmatprep.subr.mxu0 0.0
  %174 = vmatpush1.msra.mxu0 0.0
  %175 = vmatprep.subr.mxu0 0.0
  %176 = vmatpush1.msra.mxu0 0.0
  %177 = vmatprep.subr.mxu0 0.0
  %178 = vmatpush1.msra.mxu0 0.0
  %179 = vmatprep.subr.mxu0 0.0
  %180 = vmatpush1.msra.mxu0 0.0
  %181 = vmatprep.subr.mxu0 0.0
  %182 = vmatpush1.msra.mxu0 0.0
  %183 = vmatprep.subr.mxu0 0.0
  %184 = vmatpush1.msra.mxu0 0.0
  %185 = vmatprep.subr.mxu0 0.0
  %186 = vmatpush1.msra.mxu0 0.0
  %187 = vmatprep.subr.mxu0 0.0
  %188 = vmatpush1.msra.mxu0 0.0
  %189 = vmatprep.subr.mxu0 0.0
  %190 = vmatpush1.msra.mxu0 0.0
  %191 = vmatprep.mubr.f32.mxu0 0.0
  %192 = vmatmul.mubr.f32.gmra.mrb[0].mxu0 %v121
  %v193 = vpop.f32.mrb[0].mxu0
  %v194 = vadd.f32 %v117, %v193
  %v195 = vpop.f32.mrb[0].mxu0
  %196 = vdwg.mxu0
  %vm197 = vcmask 23552
  %v198 = vsel %vm197, %v194, -inf
  %199 = vmax.xlane.f32.xlu0 %v198
  %v200 = vpop.xlane.xlu0 %199
  %v201 = vsub.f32 %v194, %v200
  %v202 = vmul.f32 %v201, 1.442695
  %v203 = vpow.pop %v202
  %v204 = vsel %vm197, %v203, 0.0
  %205 = vadd.xlane.f32.xlu0 %v204
  %v206 = vpop.xlane.xlu0 %205
  %v207 = vrcp.pop %v206
  %v208 = vmul.f32 %v203, %v207
  %209 = vst.msk [vmem:[%s5] sm:$0xff] %vm197, %v208
  // Predicated region
  $region22: #{tpu_custom_call.1} parent=0 // pred_check
    _
  $region23: #{tpu_custom_call.1} parent=0 // pred_check_branch
    %211 = sbr.rel (0) target = $region25
  $region24: #{tpu_custom_call.1} parent=0 // pred_region
    _
  $region25: #{tpu_custom_call.1} parent=0 // pred_fallthru
    _
  // Predicated region
  $region26: #{tpu_custom_call.1} parent=0 // pred_check
    _
  $region27: #{tpu_custom_call.1} parent=0 // pred_check_branch
    %213 = sbr.rel (0) target = $region29
  $region28: #{tpu_custom_call.1} parent=0 // pred_region
    _
  $region29: #{tpu_custom_call.1} parent=0 // pred_fallthru
    _

</llo_original>
